<compile_context>
chip_gen: v5e
topology: v5e:2x2
jax: 0.10.0
libtpu: 0.0.40
codegen_flags: <defaults>
</compile_context>

<pallas_src>
import math

import jax
import jax.numpy as jnp
from jax.experimental import pallas as pl
from jax.experimental.pallas import tpu as pltpu


def _round_up(x: int, m: int) -> int:
    return ((x + m - 1) // m) * m


def _build_embedding(num_steps: int, dim: float) -> jnp.ndarray:
    """Replicates DiffusionEmbedding._build_embedding (dim = embedding_dim / 2)."""
    dim_i = int(dim)
    steps = jnp.arange(num_steps, dtype=jnp.float32)[:, None]          # (T, 1)
    frequencies = 10.0 ** (jnp.arange(dim_i, dtype=jnp.float32)
                           / (dim_i - 1) * 4.0)[None, :]               # (1, dim)
    table = steps * frequencies                                        # (T, dim)
    return jnp.concatenate([jnp.sin(table), jnp.cos(table)], axis=1)   # (T, 2*dim)


def _diffusion_embedding_kernel(step_ref, table_ref, w1_ref, b1_ref,
                                w2_ref, b2_ref, o_ref):
    # step_ref:  (TB, 1)     int32 diffusion-step indices for this batch tile
    # table_ref: (T_pad, E)  sinusoidal embedding table (VMEM-resident)
    # w1_ref:    (E, P), b1_ref: (1, P)   (biases always f32)
    # w2_ref:    (P, P), b2_ref: (1, P)
    # o_ref:     (TB, P)
    tb = step_ref.shape[0]
    t = table_ref.shape[0]

    # Fused gather: x = one_hot(step) @ table, computed on the MXU.
    steps = step_ref[...]                                         # (TB, 1)
    iota = jax.lax.broadcasted_iota(jnp.int32, (tb, t), 1)        # (TB, T_pad)
    onehot = (iota == steps).astype(table_ref.dtype)              # (TB, T_pad)
    x = jnp.dot(onehot, table_ref[...], preferred_element_type=jnp.float32)

    # Projection 1 + SiLU (bias add / activation on the f32 accumulator).
    x = x.astype(w1_ref.dtype)
    h = jnp.dot(x, w1_ref[...], preferred_element_type=jnp.float32) + b1_ref[...]
    h = h * jax.nn.sigmoid(h)

    # Projection 2 + SiLU.
    h = h.astype(w2_ref.dtype)
    o = jnp.dot(h, w2_ref[...], preferred_element_type=jnp.float32) + b2_ref[...]
    o = o * jax.nn.sigmoid(o)
    o_ref[...] = o.astype(o_ref.dtype)


def diffusion_embedding_forward(diffusion_step, embedding, w1, b1, w2, b2,
                                *, block_b: int = 256, mxu_dtype=None):
    """diffusion_step: int (B,); embedding: (num_steps, E); W (in,out), b (out,).

    mxu_dtype=jnp.bfloat16 casts the MXU operands (table + weights) to bf16
    while keeping f32 accumulation / bias / SiLU (recommended on v6e/v7x).
    """
    B = int(diffusion_step.shape[0])
    T, E = embedding.shape
    P = w1.shape[1]

    if mxu_dtype is not None:
        embedding = embedding.astype(mxu_dtype)
        w1 = w1.astype(mxu_dtype)
        w2 = w2.astype(mxu_dtype)

    # Pad the step count (sublane axis of the table / contraction dim of the
    # one-hot matmul) to a multiple of 8; padded rows are never selected.
    T_pad = _round_up(T, 8)
    if T_pad != T:
        embedding = jnp.pad(embedding, ((0, T_pad - T), (0, 0)))

    # Pad / tile the batch (matmul M) axis: sublane-aligned tile up to block_b.
    TB = min(block_b, _round_up(B, 8))
    B_pad = _round_up(B, TB)
    steps = diffusion_step.astype(jnp.int32)
    if B_pad != B:
        steps = jnp.pad(steps, (0, B_pad - B))     # padded rows read table row 0
    steps2d = steps.reshape(B_pad, 1)

    grid = (B_pad // TB,)
    out = pl.pallas_call(
        _diffusion_embedding_kernel,
        out_shape=jax.ShapeDtypeStruct((B_pad, P), jnp.float32),
        grid_spec=pltpu.PrefetchScalarGridSpec(
            num_scalar_prefetch=0,
            grid=grid,
            in_specs=[
                pl.BlockSpec((TB, 1), lambda i: (i, 0)),      # step indices
                pl.BlockSpec((T_pad, E), lambda i: (0, 0)),   # sinusoid table
                pl.BlockSpec((E, P), lambda i: (0, 0)),       # W1 (VMEM-resident)
                pl.BlockSpec((1, P), lambda i: (0, 0)),       # b1
                pl.BlockSpec((P, P), lambda i: (0, 0)),       # W2
                pl.BlockSpec((1, P), lambda i: (0, 0)),       # b2
            ],
            out_specs=pl.BlockSpec((TB, P), lambda i: (i, 0)),
        ),
        compiler_params=pltpu.CompilerParams(
            dimension_semantics=("parallel",)),
    )(steps2d, embedding, w1, b1.reshape(1, P), w2, b2.reshape(1, P))
    return out[:B]


def _init_linear(key, fan_in, fan_out):
    """Deterministic init matching nn.Linear's U(-1/sqrt(fan_in), 1/sqrt(fan_in))."""
    kw, kb = jax.random.split(key)
    bound = 1.0 / math.sqrt(fan_in)
    w = jax.random.uniform(kw, (fan_in, fan_out), jnp.float32, -bound, bound)
    b = jax.random.uniform(kb, (fan_out,), jnp.float32, -bound, bound)
    return w, b


def _reference_forward(diffusion_step, embedding, w1, b1, w2, b2):
    x = jnp.take(embedding, diffusion_step, axis=0)
    x = x @ w1 + b1
    x = x * jax.nn.sigmoid(x)
    x = x @ w2 + b2
    x = x * jax.nn.sigmoid(x)
    return x


if __name__ == "__main__":
    num_steps = 50
    embedding_dim = 128          # module default
    projection_dim = 128         # projection_dim=None -> embedding_dim
    batch = 8                    # a batch of diffusion steps

    key = jax.random.PRNGKey(0)
    k1, k2, k3 = jax.random.split(key, 3)

    embedding = _build_embedding(num_steps, embedding_dim / 2)      # (50, 128)
    w1, b1 = _init_linear(k1, embedding_dim, projection_dim)        # (128,128),(128,)
    w2, b2 = _init_linear(k2, projection_dim, projection_dim)       # (128,128),(128,)

    diffusion_step = jax.random.randint(k3, (batch,), 0, num_steps, dtype=jnp.int32)
    ref = _reference_forward(diffusion_step, embedding, w1, b1, w2, b2)

    # f32 path (numerically matches the PyTorch module).
    out = diffusion_embedding_forward(diffusion_step, embedding, w1, b1, w2, b2)
    out = jax.block_until_ready(out)
    assert out.shape == (batch, projection_dim)
    assert jnp.allclose(out, ref, atol=1e-5, rtol=1e-5)

    # Non-multiple-of-8 batch exercises the padding / slicing path.
    out5 = diffusion_embedding_forward(diffusion_step[:5], embedding, w1, b1, w2, b2)
    out5 = jax.block_until_ready(out5)
    assert jnp.allclose(out5, ref[:5], atol=1e-5, rtol=1e-5)

    # bf16 MXU-operand path (v6e/v7x recommendation): operands bf16, accum f32.
    out_bf16 = diffusion_embedding_forward(diffusion_step, embedding, w1, b1, w2, b2,
                                           mxu_dtype=jnp.bfloat16)
    out_bf16 = jax.block_until_ready(out_bf16)
    assert jnp.allclose(out_bf16, ref, atol=5e-2, rtol=5e-2)

    print("KERNEL_OK")
</pallas_src>

<mosaic_0001>
module attributes {stable_mosaic.version = 11 : i64} {
  func.func @_diffusion_embedding_kernel(%arg0: i32, %arg1: memref<8x1xi32, #tpu.memory_space<vmem>>, %arg2: memref<56x128xf32, #tpu.memory_space<vmem>>, %arg3: memref<128x128xf32, #tpu.memory_space<vmem>>, %arg4: memref<1x128xf32, #tpu.memory_space<vmem>>, %arg5: memref<128x128xf32, #tpu.memory_space<vmem>>, %arg6: memref<1x128xf32, #tpu.memory_space<vmem>>, %arg7: memref<8x128xf32, #tpu.memory_space<vmem>>) attributes {dimension_semantics = [#tpu.dimension_semantics<parallel>], iteration_bounds = array<i64: 1>, scalar_prefetch = 0 : i64, scratch_operands = 0 : i64, tpu.core_type = #tpu.core_type<tc>, window_params = [{transform_indices = @transform_0, window_bounds = array<i64: 8, 1>}, {pipeline_mode = #tpu.pipeline_mode<synchronous>, transform_indices = @transform_1, window_bounds = array<i64: 56, 128>}, {pipeline_mode = #tpu.pipeline_mode<synchronous>, transform_indices = @transform_2, window_bounds = array<i64: 128, 128>}, {pipeline_mode = #tpu.pipeline_mode<synchronous>, transform_indices = @transform_3, window_bounds = array<i64: 1, 128>}, {pipeline_mode = #tpu.pipeline_mode<synchronous>, transform_indices = @transform_4, window_bounds = array<i64: 128, 128>}, {pipeline_mode = #tpu.pipeline_mode<synchronous>, transform_indices = @transform_5, window_bounds = array<i64: 1, 128>}, {transform_indices = @transform_6, window_bounds = array<i64: 8, 128>}]} {
    %c0 = arith.constant 0 : index
    %c0_0 = arith.constant 0 : index
    %0 = vector.load %arg1[%c0, %c0_0] : memref<8x1xi32, #tpu.memory_space<vmem>>, vector<8x1xi32>
    %1 = tpu.iota {dimensions = array<i32: 1>} : vector<8x56xi32>
    %2 = vector.broadcast %0 : vector<8x1xi32> to vector<8x56xi32>
    %3 = arith.cmpi eq, %1, %2 : vector<8x56xi32>
    %4 = arith.extui %3 : vector<8x56xi1> to vector<8x56xi32>
    %5 = arith.sitofp %4 : vector<8x56xi32> to vector<8x56xf32>
    %c0_1 = arith.constant 0 : index
    %c0_2 = arith.constant 0 : index
    %6 = vector.load %arg2[%c0_1, %c0_2] : memref<56x128xf32, #tpu.memory_space<vmem>>, vector<56x128xf32>
    %cst = arith.constant dense<0.000000e+00> : vector<8x128xf32>
    %7 = tpu.matmul %5, %6, %cst {dimension_numbers = #tpu.dot_dimension_numbers<[1], [0], [0], [1], [0, 0, 1, 1], [], []>} : vector<8x56xf32>, vector<56x128xf32>, vector<8x128xf32> -> vector<8x128xf32>
    %c0_3 = arith.constant 0 : index
    %c0_4 = arith.constant 0 : index
    %8 = vector.load %arg3[%c0_3, %c0_4] : memref<128x128xf32, #tpu.memory_space<vmem>>, vector<128x128xf32>
    %cst_5 = arith.constant dense<0.000000e+00> : vector<8x128xf32>
    %9 = tpu.matmul %7, %8, %cst_5 {dimension_numbers = #tpu.dot_dimension_numbers<[1], [0], [0], [1], [0, 0, 1, 1], [], []>} : vector<8x128xf32>, vector<128x128xf32>, vector<8x128xf32> -> vector<8x128xf32>
    %c0_6 = arith.constant 0 : index
    %c0_7 = arith.constant 0 : index
    %10 = vector.load %arg4[%c0_6, %c0_7] : memref<1x128xf32, #tpu.memory_space<vmem>>, vector<1x128xf32>
    %11 = vector.broadcast %10 : vector<1x128xf32> to vector<8x128xf32>
    %12 = arith.addf %9, %11 : vector<8x128xf32>
    %13 = arith.negf %12 : vector<8x128xf32>
    %14 = math.exp %13 : vector<8x128xf32>
    %cst_8 = arith.constant 1.000000e+00 : f32
    %15 = vector.broadcast %cst_8 : f32 to vector<8x128xf32>
    %16 = arith.addf %15, %14 : vector<8x128xf32>
    %17 = arith.divf %15, %16 : vector<8x128xf32>
    %18 = arith.mulf %12, %17 : vector<8x128xf32>
    %c0_9 = arith.constant 0 : index
    %c0_10 = arith.constant 0 : index
    %19 = vector.load %arg5[%c0_9, %c0_10] : memref<128x128xf32, #tpu.memory_space<vmem>>, vector<128x128xf32>
    %cst_11 = arith.constant dense<0.000000e+00> : vector<8x128xf32>
    %20 = tpu.matmul %18, %19, %cst_11 {dimension_numbers = #tpu.dot_dimension_numbers<[1], [0], [0], [1], [0, 0, 1, 1], [], []>} : vector<8x128xf32>, vector<128x128xf32>, vector<8x128xf32> -> vector<8x128xf32>
    %c0_12 = arith.constant 0 : index
    %c0_13 = arith.constant 0 : index
    %21 = vector.load %arg6[%c0_12, %c0_13] : memref<1x128xf32, #tpu.memory_space<vmem>>, vector<1x128xf32>
    %22 = vector.broadcast %21 : vector<1x128xf32> to vector<8x128xf32>
    %23 = arith.addf %20, %22 : vector<8x128xf32>
    %24 = arith.negf %23 : vector<8x128xf32>
    %25 = math.exp %24 : vector<8x128xf32>
    %cst_14 = arith.constant 1.000000e+00 : f32
    %26 = vector.broadcast %cst_14 : f32 to vector<8x128xf32>
    %27 = arith.addf %26, %25 : vector<8x128xf32>
    %28 = arith.divf %26, %27 : vector<8x128xf32>
    %29 = arith.mulf %23, %28 : vector<8x128xf32>
    %c0_15 = arith.constant 0 : index
    %c0_16 = arith.constant 0 : index
    %30 = vector.load %arg7[%c0_15, %c0_16] : memref<8x128xf32, #tpu.memory_space<vmem>>, vector<8x128xf32>
    tpu.vector_store %arg7[%c0_15, %c0_16], %29 {strides = array<i32>} : memref<8x128xf32, #tpu.memory_space<vmem>>, vector<8x128xf32>,
    return
  }
  func.func @transform_0(%arg0: i32) -> (i32, i32) {
    %c0_i32 = arith.constant 0 : i32
    %c0_i32_0 = arith.constant 0 : i32
    return %arg0, %c0_i32 : i32, i32
  }
  func.func @transform_1(%arg0: i32) -> (i32, i32) {
    %c0_i32 = arith.constant 0 : i32
    %c0_i32_0 = arith.constant 0 : i32
    %c0_i32_1 = arith.constant 0 : i32
    return %c0_i32, %c0_i32_0 : i32, i32
  }
  func.func @transform_2(%arg0: i32) -> (i32, i32) {
    %c0_i32 = arith.constant 0 : i32
    %c0_i32_0 = arith.constant 0 : i32
    %c0_i32_1 = arith.constant 0 : i32
    return %c0_i32, %c0_i32_0 : i32, i32
  }
  func.func @transform_3(%arg0: i32) -> (i32, i32) {
    %c0_i32 = arith.constant 0 : i32
    %c0_i32_0 = arith.constant 0 : i32
    %c0_i32_1 = arith.constant 0 : i32
    return %c0_i32, %c0_i32_0 : i32, i32
  }
  func.func @transform_4(%arg0: i32) -> (i32, i32) {
    %c0_i32 = arith.constant 0 : i32
    %c0_i32_0 = arith.constant 0 : i32
    %c0_i32_1 = arith.constant 0 : i32
    return %c0_i32, %c0_i32_0 : i32, i32
  }
  func.func @transform_5(%arg0: i32) -> (i32, i32) {
    %c0_i32 = arith.constant 0 : i32
    %c0_i32_0 = arith.constant 0 : i32
    %c0_i32_1 = arith.constant 0 : i32
    return %c0_i32, %c0_i32_0 : i32, i32
  }
  func.func @transform_6(%arg0: i32) -> (i32, i32) {
    %c0_i32 = arith.constant 0 : i32
    %c0_i32_0 = arith.constant 0 : i32
    return %arg0, %c0_i32 : i32, i32
  }
}

</mosaic_0001>

<llo_original>
// kernel: tpu_custom_call.1
$region0: #{tpu_custom_call.1}
  #allocation0 [shape = 'u32[]', space=smem, size = 0x4, offset = 0x4, fixed_abs, tag = 'smem constant byte address 0x4 - core index']
  #allocation1 [shape = 'u32[72,128]{1,0:T(1,128)}', space=vmem, size = 0x9000, scoped, tag = 'internal scratch']
  %s0 = inlined_call_operand.vmem [shape: s32[8,1], index: 0, kind: input, shape index: {}]
  %s1 = inlined_call_operand.hbm [shape: f32[56,128], index: 1, kind: input, shape index: {}]
  %s2 = inlined_call_operand.hbm [shape: f32[128,128], index: 2, kind: input, shape index: {}]
  %s3 = inlined_call_operand.vmem [shape: f32[1,128], index: 3, kind: input, shape index: {}]
  %s4 = inlined_call_operand.hbm [shape: f32[128,128], index: 4, kind: input, shape index: {}]
  %s5 = inlined_call_operand.vmem [shape: f32[1,128], index: 5, kind: input, shape index: {}]
  %s6 = inlined_call_operand.hbm [shape: f32[8,128], index: 6, kind: output, shape index: {}]
  %s7 = sld [smem:[#allocation0]]
  $region46: #{tpu_custom_call.1} parent=0
    _
  %s9 = ssub.s32 1, %s7
  %s10 = scalar_select 0, %s9, %s7
  $region1: #{tpu_custom_call.1} parent=0
    #allocation2 [shape = 'u8[28672]{0}', space=vmem, size = 0x7000, scoped, tag = 'input window, operand 1, single buffered']
    #allocation3 [shape = 's32[1]{0}', space=sflag, size = 0x4, scoped, tag = 'scoped memory for tpu_custom_call.1']
    #allocation4 [shape = 's32[1]{0}', space=sflag, size = 0x4, scoped, tag = 'scoped memory for tpu_custom_call.1']
    #allocation5 [shape = 'u8[65536]{0}', space=vmem, size = 0x10000, scoped, tag = 'input window, operand 2, single buffered']
    #allocation6 [shape = 's32[1]{0}', space=sflag, size = 0x4, scoped, tag = 'scoped memory for tpu_custom_call.1']
    #allocation7 [shape = 'u8[65536]{0}', space=vmem, size = 0x10000, scoped, tag = 'input window, operand 4, single buffered']
    #allocation8 [shape = 'u8[4096]{0}', space=vmem, size = 0x1000, scoped, tag = 'output window, operand 0, single buffered']
    %11 = vsyncpa [#allocation3], 0
    %12 = vsyncpa [#allocation6], 0
    %13 = vsyncpa [#allocation4], 0
    // Predicated region
    $region2: #{tpu_custom_call.1} parent=1 // pred_check
      _
    $region3: #{tpu_custom_call.1} parent=1 // pred_check_branch
      %15 = sbr.rel (0) target = $region5
    $region4: #{tpu_custom_call.1} parent=1 // pred_region
      _
    $region5: #{tpu_custom_call.1} parent=1 // pred_fallthru
      _
    // Predicated region
    $region6: #{tpu_custom_call.1} parent=1 // pred_check
      _
    $region7: #{tpu_custom_call.1} parent=1 // pred_check_branch
      %17 = sbr.rel (0) target = $region9
    $region8: #{tpu_custom_call.1} parent=1 // pred_region
      %19 = vsyncadd [#allocation3], 0
      %s20 = sshll.u32 %s1, 4
      %s21 = int_to_ptr.hbm [resolvable:$true] %s20
      %s22 = sshll.u32 [#allocation2], 4
      %s23 = int_to_ptr.vmem [resolvable:$true] %s22
      %28 = dma.hbm_to_vmem [thread:$0]  %s21, 896, %s23, [#allocation3], 128, 128, 8
    $region9: #{tpu_custom_call.1} parent=1 // pred_fallthru
      _
    // Predicated region
    $region10: #{tpu_custom_call.1} parent=1 // pred_check
      _
    $region11: #{tpu_custom_call.1} parent=1 // pred_check_branch
      %30 = sbr.rel (0) target = $region13
    $region12: #{tpu_custom_call.1} parent=1 // pred_region
      %32 = vsyncadd [#allocation6], 0
      %s33 = sshll.u32 %s2, 4
      %s34 = int_to_ptr.hbm [resolvable:$true] %s33
      %s35 = sshll.u32 [#allocation5], 4
      %s36 = int_to_ptr.vmem [resolvable:$true] %s35
      %41 = dma.hbm_to_vmem [thread:$0]  %s34, 2048, %s36, [#allocation6], 128, 128, 8
    $region13: #{tpu_custom_call.1} parent=1 // pred_fallthru
      _
    // Predicated region
    $region14: #{tpu_custom_call.1} parent=1 // pred_check
      _
    $region15: #{tpu_custom_call.1} parent=1 // pred_check_branch
      %43 = sbr.rel (0) target = $region17
    $region16: #{tpu_custom_call.1} parent=1 // pred_region
      _
    $region17: #{tpu_custom_call.1} parent=1 // pred_fallthru
      _
    // Predicated region
    $region18: #{tpu_custom_call.1} parent=1 // pred_check
      _
    $region19: #{tpu_custom_call.1} parent=1 // pred_check_branch
      %45 = sbr.rel (0) target = $region21
    $region20: #{tpu_custom_call.1} parent=1 // pred_region
      %47 = vsyncadd [#allocation6], 0
      %s48 = sshll.u32 %s4, 4
      %s49 = int_to_ptr.hbm [resolvable:$true] %s48
      %s50 = sshll.u32 [#allocation7], 4
      %s51 = int_to_ptr.vmem [resolvable:$true] %s50
      %56 = dma.hbm_to_vmem [thread:$0]  %s49, 2048, %s51, [#allocation6], 128, 128, 8
    $region21: #{tpu_custom_call.1} parent=1 // pred_fallthru
      _
    // Predicated region
    $region22: #{tpu_custom_call.1} parent=1 // pred_check
      _
    $region23: #{tpu_custom_call.1} parent=1 // pred_check_branch
      %58 = sbr.rel (0) target = $region25
    $region24: #{tpu_custom_call.1} parent=1 // pred_region
      _
    $region25: #{tpu_custom_call.1} parent=1 // pred_fallthru
      _
    // Predicated region
    $region26: #{tpu_custom_call.1} parent=1 // pred_check
      _
    $region27: #{tpu_custom_call.1} parent=1 // pred_check_branch
      %60 = sbr.rel (0) target = $region29
    $region28: #{tpu_custom_call.1} parent=1 // pred_region
      %62 = dma.done [#allocation3], 896
    $region29: #{tpu_custom_call.1} parent=1 // pred_fallthru
      _
    // Predicated region
    $region30: #{tpu_custom_call.1} parent=1 // pred_check
      _
    $region31: #{tpu_custom_call.1} parent=1 // pred_check_branch
      %64 = sbr.rel (0) target = $region33
    $region32: #{tpu_custom_call.1} parent=1 // pred_region
      %66 = dma.done [#allocation6], 2048
    $region33: #{tpu_custom_call.1} parent=1 // pred_fallthru
      _
    // Predicated region
    $region34: #{tpu_custom_call.1} parent=1 // pred_check
      _
    $region35: #{tpu_custom_call.1} parent=1 // pred_check_branch
      %68 = sbr.rel (0) target = $region37
    $region36: #{tpu_custom_call.1} parent=1 // pred_region
      %70 = dma.done [#allocation6], 2048
    $region37: #{tpu_custom_call.1} parent=1 // pred_fallthru
      _
    %v71 = vld [vmem:[%s0] sm:$0xff]
    %v72 = vlaneseq
    %v73 = vand.u32 %v72, 127
    %74 = vset.pattern.permute.xlu0 0
    %75 = vperm.xlu0 %74, %v71
    %v76 = vpop.permute.xlu0 %75
    %vm77 = vcmp.eq.s32.totalorder %v73, %v76
    %v78 = vsel %vm77, 1, 0
    %v79 = vcvt.s32.f32 %v78
    %v80 = vld [vmem:[#allocation2] sm:$0xff]
    %v81 = vld [vmem:[#allocation2 + $0x8] sm:$0xff]
    %v82 = vld [vmem:[#allocation2 + $0x10] sm:$0xff]
    %v83 = vld [vmem:[#allocation2 + $0x18] sm:$0xff]
    %v84 = vld [vmem:[#allocation2 + $0x20] sm:$0xff]
    %v85 = vld [vmem:[#allocation2 + $0x28] sm:$0xff]
    %v86 = vld [vmem:[#allocation2 + $0x30] sm:$0xff]
    %vm87 = vcmask 457728
    %v89 = vsel %vm87, %v79, 0
    %91 = vmatpush.msra.mxu0 0.0
    %92 = vmatpush.msra.mxu0 0.0
    %93 = vmatpush.msra.mxu0 0.0
    %94 = vmatpush.msra.mxu0 0.0
    %95 = vmatpush.msra.mxu0 0.0
    %96 = vmatpush.msra.mxu0 0.0
    %97 = vmatpush.msra.mxu0 0.0
    %98 = vmatpush.msra.mxu0 0.0
    %99 = vmatpush.msra.mxu0 0.0
    %100 = vmatpush.msra.mxu0 %v86
    %101 = vmatpush.msra.mxu0 %v85
    %102 = vmatpush.msra.mxu0 %v84
    %103 = vmatpush.msra.mxu0 %v83
    %104 = vmatpush.msra.mxu0 %v82
    %105 = vmatpush.msra.mxu0 %v81
    %106 = vmatpush.msra.mxu0 %v80
    %107 = vmatmul.f32.gmra.mxu0 %v89
    %v108 = vpop.f32.mrf.mxu0
    %v109 = vadd.f32 0.0, %v108
    %110 = vdwg.mxu0
    %v111 = vld [vmem:[#allocation5] sm:$0xff]
    %v112 = vld [vmem:[#allocation5 + $0x8] sm:$0xff]
    %v113 = vld [vmem:[#allocation5 + $0x10] sm:$0xff]
    %v114 = vld [vmem:[#allocation5 + $0x18] sm:$0xff]
    %v115 = vld [vmem:[#allocation5 + $0x20] sm:$0xff]
    %v116 = vld [vmem:[#allocation5 + $0x28] sm:$0xff]
    %v117 = vld [vmem:[#allocation5 + $0x30] sm:$0xff]
    %v118 = vld [vmem:[#allocation5 + $0x38] sm:$0xff]
    %v119 = vld [vmem:[#allocation5 + $0x40] sm:$0xff]
    %v120 = vld [vmem:[#allocation5 + $0x48] sm:$0xff]
    %v121 = vld [vmem:[#allocation5 + $0x50] sm:$0xff]
    %v122 = vld [vmem:[#allocation5 + $0x58] sm:$0xff]
    %v123 = vld [vmem:[#allocation5 + $0x60] sm:$0xff]
    %v124 = vld [vmem:[#allocation5 + $0x68] sm:$0xff]
    %v125 = vld [vmem:[#allocation5 + $0x70] sm:$0xff]
    %v126 = vld [vmem:[#allocation5 + $0x78] sm:$0xff]
    %v127 = vld [vmem:[%s3] sm:$0x1]
    %v129 = vperm.slane %v127, 0
    %131 = vmatpush.msra.mxu0 %v126
    %132 = vmatpush.msra.mxu0 %v125
    %133 = vmatpush.msra.mxu0 %v124
    %134 = vmatpush.msra.mxu0 %v123
    %135 = vmatpush.msra.mxu0 %v122
    %136 = vmatpush.msra.mxu0 %v121
    %137 = vmatpush.msra.mxu0 %v120
    %138 = vmatpush.msra.mxu0 %v119
    %139 = vmatpush.msra.mxu0 %v118
    %140 = vmatpush.msra.mxu0 %v117
    %141 = vmatpush.msra.mxu0 %v116
    %142 = vmatpush.msra.mxu0 %v115
    %143 = vmatpush.msra.mxu0 %v114
    %144 = vmatpush.msra.mxu0 %v113
    %145 = vmatpush.msra.mxu0 %v112
    %146 = vmatpush.msra.mxu0 %v111
    %147 = vmatmul.f32.gmra.mxu0 %v109
    %v148 = vpop.f32.mrf.mxu0
    %v149 = vadd.f32 %v129, %v148
    %150 = vdwg.mxu0
    %v151 = vxor.u32 %v149, 2147483648
    %v152 = vmul.f32 %v151, 1.442695
    %v153 = vpow.pop %v152
    %v154 = vadd.f32 %v153, 1.0
    %v155 = vrcp.pop %v154
    %v156 = vmul.f32 %v154, %v155
    %v157 = vsub.f32 1.0, %v156
    %v158 = vmul.f32 %v155, %v157
    %v159 = vadd.f32 %v155, %v158
    %vm160 = vweird.f32 %v154
    %vm161 = vweird.f32 %v155
    %vm162 = vmor %vm160, %vm161
    %v163 = vsel %vm162, %v155, %v159
    %v164 = vand.u32 2147483647, %v154
    %vm165 = vcmp.eq.f32.partialorder %v164, 8.507059e+37
    %v166 = vand.u32 %v154, 2147483648
    %v167 = vor.u32 1.1754944e-38, %v166
    %v168 = vsel %vm165, %v167, %v163
    %v169 = vmul.f32 1.0, %v168
    %v170 = vmul.f32 %v149, %v169
    %v171 = vld [vmem:[#allocation7] sm:$0xff]
    %v172 = vld [vmem:[#allocation7 + $0x8] sm:$0xff]
    %v173 = vld [vmem:[#allocation7 + $0x10] sm:$0xff]
    %v174 = vld [vmem:[#allocation7 + $0x18] sm:$0xff]
    %v175 = vld [vmem:[#allocation7 + $0x20] sm:$0xff]
    %v176 = vld [vmem:[#allocation7 + $0x28] sm:$0xff]
    %v177 = vld [vmem:[#allocation7 + $0x30] sm:$0xff]
    %v178 = vld [vmem:[#allocation7 + $0x38] sm:$0xff]
    %v179 = vld [vmem:[#allocation7 + $0x40] sm:$0xff]
    %v180 = vld [vmem:[#allocation7 + $0x48] sm:$0xff]
    %v181 = vld [vmem:[#allocation7 + $0x50] sm:$0xff]
    %v182 = vld [vmem:[#allocation7 + $0x58] sm:$0xff]
    %v183 = vld [vmem:[#allocation7 + $0x60] sm:$0xff]
    %v184 = vld [vmem:[#allocation7 + $0x68] sm:$0xff]
    %v185 = vld [vmem:[#allocation7 + $0x70] sm:$0xff]
    %v186 = vld [vmem:[#allocation7 + $0x78] sm:$0xff]
    %v187 = vld [vmem:[%s5] sm:$0x1]
    %v189 = vperm.slane %v187, 0
    %191 = vmatpush.msra.mxu0 %v186
    %192 = vmatpush.msra.mxu0 %v185
    %193 = vmatpush.msra.mxu0 %v184
    %194 = vmatpush.msra.mxu0 %v183
    %195 = vmatpush.msra.mxu0 %v182
    %196 = vmatpush.msra.mxu0 %v181
    %197 = vmatpush.msra.mxu0 %v180
    %198 = vmatpush.msra.mxu0 %v179
    %199 = vmatpush.msra.mxu0 %v178
    %200 = vmatpush.msra.mxu0 %v177
    %201 = vmatpush.msra.mxu0 %v176
    %202 = vmatpush.msra.mxu0 %v175
    %203 = vmatpush.msra.mxu0 %v174
    %204 = vmatpush.msra.mxu0 %v173
    %205 = vmatpush.msra.mxu0 %v172
    %206 = vmatpush.msra.mxu0 %v171
    %207 = vmatmul.f32.gmra.mxu0 %v170
    %v208 = vpop.f32.mrf.mxu0
    %v209 = vadd.f32 %v189, %v208
    %210 = vdwg.mxu0
    %v211 = vxor.u32 %v209, 2147483648
    %v212 = vmul.f32 %v211, 1.442695
    %v213 = vpow.pop %v212
    %v214 = vadd.f32 %v213, 1.0
    %v215 = vrcp.pop %v214
    %v216 = vmul.f32 %v214, %v215
    %v217 = vsub.f32 1.0, %v216
    %v218 = vmul.f32 %v215, %v217
    %v219 = vadd.f32 %v215, %v218
    %vm220 = vweird.f32 %v214
    %vm221 = vweird.f32 %v215
    %vm222 = vmor %vm220, %vm221
    %v223 = vsel %vm222, %v215, %v219
    %v224 = vand.u32 2147483647, %v214
    %vm225 = vcmp.eq.f32.partialorder %v224, 8.507059e+37
    %v226 = vand.u32 %v214, 2147483648
    %v227 = vor.u32 1.1754944e-38, %v226
    %v228 = vsel %vm225, %v227, %v223
    %v229 = vmul.f32 1.0, %v228
    %v230 = vmul.f32 %v209, %v229
    %231 = vst [vmem:[#allocation8] sm:$0xff] %v230
    // Predicated region
    $region38: #{tpu_custom_call.1} parent=1 // pred_check
      _
    $region39: #{tpu_custom_call.1} parent=1 // pred_check_branch
      %233 = sbr.rel (0) target = $region41
    $region40: #{tpu_custom_call.1} parent=1 // pred_region
      %235 = vsyncadd [#allocation4], 0
      %s237 = sshll.u32 [#allocation8], 4
      %s238 = int_to_ptr.vmem [resolvable:$true] %s237
      %s239 = sshll.u32 %s6, 4
      %s240 = int_to_ptr.hbm [resolvable:$true] %s239
      %242 = dma.vmem_to_hbm [thread:$0]  %s238, 128, %s240, [#allocation4]
    $region41: #{tpu_custom_call.1} parent=1 // pred_fallthru
      _
    // Predicated region
    $region42: #{tpu_custom_call.1} parent=1 // pred_check
      _
    $region43: #{tpu_custom_call.1} parent=1 // pred_check_branch
      %244 = sbr.rel (0) target = $region45
    $region44: #{tpu_custom_call.1} parent=1 // pred_region
      %246 = dma.done [#allocation4], 128
    $region45: #{tpu_custom_call.1} parent=1 // pred_fallthru
      _
    %247 = vsyncpa [#allocation3], 1
    %248 = vsyncpa [#allocation6], 1
    %249 = vsyncpa [#allocation4], 1

</llo_original>
